<compile_context>
chip_gen: v7x
topology: tpu7x:2x2x1
jax: 0.10.0
libtpu: 0.0.40
codegen_flags: <defaults>
</compile_context>

<pallas_src>
import functools

import jax
import jax.numpy as jnp
from jax.experimental import pallas as pl
from jax.experimental.pallas import tpu as pltpu


# ---------------------------------------------------------------------------
# Kernel
# ---------------------------------------------------------------------------
def _attention_kernel(x_ref, gamma_ref, beta_ref, wqkv_ref, wout_ref, bout_ref,
                      o_ref, qkv_ref, attn_ref, *, batch_per_block, seq_len,
                      heads, dim_head, eps):
    """One grid step = `batch_per_block` full sequences, laid out as rows."""
    inner = heads * dim_head
    n = seq_len

    # ---- LayerNorm over last dim (f32, nn.LayerNorm biased variance) ----
    x = x_ref[...].astype(jnp.float32)                        # (rows, D)
    mean = jnp.mean(x, axis=-1, keepdims=True)
    xc = x - mean
    var = jnp.mean(xc * xc, axis=-1, keepdims=True)
    xn = xc * jax.lax.rsqrt(var + eps)
    xn = xn * gamma_ref[0] + beta_ref[0]

    # ---- QKV projection: one big 2D matmul, bf16 in / f32 accumulate ----
    # Softmax scale is pre-folded into the Q columns of wqkv (prepare_params),
    # so no per-score scaling is needed.  Single bf16 cast pass into scratch.
    qkv = jnp.dot(xn.astype(jnp.bfloat16), wqkv_ref[...],
                  preferred_element_type=jnp.float32)          # (rows, 3*inner)
    qkv_ref[...] = qkv.astype(jnp.bfloat16)

    # ---- Multi-head attention: fori over batch, static loop over heads ----
    def per_batch(b, carry):
        r0 = pl.multiple_of(b * n, n)
        for h in range(heads):
            c0 = h * dim_head
            q_h = qkv_ref[pl.ds(r0, n), pl.ds(c0, dim_head)]               # bf16
            k_h = qkv_ref[pl.ds(r0, n), pl.ds(inner + c0, dim_head)]
            v_h = qkv_ref[pl.ds(r0, n), pl.ds(2 * inner + c0, dim_head)]

            # scores = q_h @ k_h^T, f32 accumulation on the MXU
            s = jax.lax.dot_general(q_h, k_h, (((1,), (1,)), ((), ())),
                                    preferred_element_type=jnp.float32)    # (n, n)
            m = jnp.max(s, axis=-1, keepdims=True)
            p = jnp.exp(s - m)                                  # unnormalized
            l = jnp.sum(p, axis=-1, keepdims=True)
            # PV with unnormalized probs; normalize the small (n, dh) result.
            o_h = jnp.dot(p.astype(jnp.bfloat16), v_h,
                          preferred_element_type=jnp.float32)
            attn_ref[pl.ds(r0, n), pl.ds(c0, dim_head)] = (
                o_h * pl.reciprocal(l, approx=True))
        return carry

    jax.lax.fori_loop(0, batch_per_block, per_batch, 0,
                      unroll=batch_per_block <= 4)

    # ---- Output projection (bf16 in / f32 accumulate) + bias ----
    # dropout(p=0.0) is an eval-mode no-op.
    y = jnp.dot(attn_ref[...].astype(jnp.bfloat16), wout_ref[...],
                preferred_element_type=jnp.float32) + bout_ref[0]
    o_ref[...] = y.astype(o_ref.dtype)


# ---------------------------------------------------------------------------
# Wrapper
# ---------------------------------------------------------------------------
def _vmem_capacity_bytes():
    """Best-effort per-core VMEM capacity; conservative fallback (v7x)."""
    try:
        info = pltpu.get_tpu_info()
        for name in ("vmem_capacity_bytes", "vmem_bytes"):
            cap = getattr(info, name, None)
            if cap:
                return int(cap)
    except Exception:
        pass
    return 64 * 1024 * 1024


def prepare_params(params, *, heads, dim_head):
    """One-time weight prep: fold softmax scale into Q columns, cast to bf16.

    Call this once (at init), NOT per forward call — it removes the per-call
    HBM read/write pass over the weights.
    """
    D = params['ln_gamma'].shape[0]
    inner = heads * dim_head
    scale = dim_head ** (-0.5)
    wqkv = params['wqkv'].astype(jnp.float32)                   # (D, 3*inner)
    wqkv = wqkv.at[:, :inner].multiply(scale).astype(jnp.bfloat16)
    return {
        'gamma': params['ln_gamma'].reshape(1, D).astype(jnp.float32),
        'beta': params['ln_beta'].reshape(1, D).astype(jnp.float32),
        'wqkv': wqkv,                                           # bf16 (D, 3*inner)
        'wout': params['wout'].astype(jnp.bfloat16),            # bf16 (inner, D)
        'bout': params['bout'].reshape(1, D).astype(jnp.float32),
    }


def attention_forward(x, prepped, *, heads, dim_head, eps=1e-5,
                      stream_io_bf16=False):
    """x: (B, N, D).  prepped: output of prepare_params()."""
    B, N, D = x.shape
    inner = heads * dim_head

    io_dtype = jnp.bfloat16 if stream_io_bf16 else x.dtype
    io_bytes = 2 if stream_io_bf16 else jnp.dtype(x.dtype).itemsize

    # --- VMEM model & limits (re-derived from chip capacity: 64 MiB on v7x,
    # --- 128 MiB on v5e/v6e) -------------------------------------------------
    vmem_cap = _vmem_capacity_bytes()
    vmem_limit = max(32 << 20, min(int(0.75 * vmem_cap), 100 << 20))
    # Resident weights (double-buffered by the pipeline).
    weight_bytes = 2 * (D * 3 * inner * 2 + inner * D * 2 + 3 * D * 4)
    budget = max(4 << 20, int(0.8 * vmem_limit) - weight_bytes)

    def _block_bytes(bt):
        rows = bt * N
        io = 2 * rows * D * io_bytes * 2          # x + out blocks, 2 buffers each
        qkv_scr = rows * 3 * inner * 2            # bf16 qkv scratch
        attn_scr = rows * inner * 4               # f32 head-output scratch
        f32_tmp = rows * D * 4 + rows * 3 * inner * 4 + 3 * N * N * 4
        return io + qkv_scr + attn_scr + f32_tmp

    if _block_bytes(1) > budget:
        raise ValueError(
            "Sequence too long for the single-block attention kernel; "
            "a flash-style KV-tiled variant is required at this N.")

    # --- Batch-block selection: keep >=2 grid steps when B>=2 (v7x has two
    # --- TensorCores sharing the parallel axis), prefer MXU-friendly row tiles.
    cap = B if B == 1 else max(1, B // 2)
    cands = [c for c in range(cap, 0, -1) if B % c == 0]
    bt = 1
    for align in (256, 128, 8, 1):
        found = False
        for c in cands:
            if align > 1 and (c * N) % align != 0:
                continue
            if _block_bytes(c) <= budget:
                bt, found = c, True
                break
        if found:
            break
    rows_per_block = bt * N

    x2d = x.reshape(B * N, D).astype(io_dtype)
    kernel = functools.partial(_attention_kernel, batch_per_block=bt,
                               seq_len=N, heads=heads, dim_head=dim_head,
                               eps=eps)

    y2d = pl.pallas_call(
        kernel,
        out_shape=jax.ShapeDtypeStruct((B * N, D), io_dtype),
        grid_spec=pltpu.PrefetchScalarGridSpec(
            num_scalar_prefetch=0,
            grid=(B // bt,),
            in_specs=[
                pl.BlockSpec((rows_per_block, D), lambda i: (i, 0)),   # x rows
                pl.BlockSpec((1, D), lambda i: (0, 0)),                # ln gamma
                pl.BlockSpec((1, D), lambda i: (0, 0)),                # ln beta
                pl.BlockSpec((D, 3 * inner), lambda i: (0, 0)),        # Wqkv bf16
                pl.BlockSpec((inner, D), lambda i: (0, 0)),            # Wout bf16
                pl.BlockSpec((1, D), lambda i: (0, 0)),                # out bias
            ],
            out_specs=pl.BlockSpec((rows_per_block, D), lambda i: (i, 0)),
            scratch_shapes=[
                pltpu.VMEM((rows_per_block, 3 * inner), jnp.bfloat16),  # qkv
                pltpu.VMEM((rows_per_block, inner), jnp.float32),       # attn out
            ],
        ),
        compiler_params=pltpu.CompilerParams(
            dimension_semantics=("parallel",),
            vmem_limit_bytes=vmem_limit),
    )(x2d, prepped['gamma'], prepped['beta'], prepped['wqkv'],
      prepped['wout'], prepped['bout'])

    return y2d.reshape(B, N, D)


# ---------------------------------------------------------------------------
# Parameters & pure-JAX reference
# ---------------------------------------------------------------------------
def make_params(key, dim, heads, dim_head):
    inner = heads * dim_head
    k1, k2, k3 = jax.random.split(key, 3)
    wqkv = jax.random.normal(k1, (3 * inner, dim), jnp.float32) * (dim ** -0.5)
    wout = jax.random.normal(k2, (dim, inner), jnp.float32) * (inner ** -0.5)
    bout = jax.random.normal(k3, (dim,), jnp.float32) * 0.01
    return {
        'ln_gamma': jnp.ones((dim,), jnp.float32),
        'ln_beta': jnp.zeros((dim,), jnp.float32),
        # pre-transposed for row-major matmuls in the kernel
        'wqkv': wqkv.T,            # (dim, 3*inner)  columns: [Q | K | V]
        'wout': wout.T,            # (inner, dim)
        'bout': bout,
    }


def reference_forward(x, params, *, heads, dim_head, eps=1e-5):
    """Pure-JAX f32 reference mirroring the PyTorch module."""
    B, N, D = x.shape
    inner = heads * dim_head
    mean = jnp.mean(x, axis=-1, keepdims=True)
    var = jnp.mean((x - mean) ** 2, axis=-1, keepdims=True)
    xn = (x - mean) / jnp.sqrt(var + eps)
    xn = xn * params['ln_gamma'] + params['ln_beta']
    qkv = xn @ params['wqkv']
    q, k, v = jnp.split(qkv, 3, axis=-1)

    def split_heads(t):
        return t.reshape(B, N, heads, dim_head).transpose(0, 2, 1, 3)

    q, k, v = map(split_heads, (q, k, v))
    dots = jnp.einsum('bhnd,bhmd->bhnm', q, k) * (dim_head ** -0.5)
    attn = jax.nn.softmax(dots, axis=-1)
    out = jnp.einsum('bhnm,bhmd->bhnd', attn, v)
    out = out.transpose(0, 2, 1, 3).reshape(B, N, inner)
    return out @ params['wout'] + params['bout']


if __name__ == "__main__":
    B, N, D = 2, 8, 32
    heads, dim_head = 4, 16      # inner_dim = 64, project_out = True

    key = jax.random.PRNGKey(0)
    kx, kp = jax.random.split(key)
    x = jax.random.normal(kx, (B, N, D), jnp.float32)
    params = make_params(kp, D, heads, dim_head)
    prepped = prepare_params(params, heads=heads, dim_head=dim_head)  # once

    y = attention_forward(x, prepped, heads=heads, dim_head=dim_head)
    y = jax.block_until_ready(y)

    y_ref = reference_forward(x, params, heads=heads, dim_head=dim_head)
    assert y.shape == (B, N, D)
    # bf16 MXU operands (f32 accumulation) + approximate reciprocal -> compare
    # against the f32 reference at bf16-level tolerance; semantic bugs would
    # show O(1) errors.
    assert jnp.allclose(y, y_ref, atol=5e-2, rtol=5e-2), "mismatch vs reference"

    print("KERNEL_OK")
</pallas_src>

<mosaic_0001>
module attributes {stable_mosaic.version = 11 : i64} {
  func.func @_attention_kernel(%arg0: i32, %arg1: memref<8x32xf32, #tpu.memory_space<vmem>>, %arg2: memref<1x32xf32, #tpu.memory_space<vmem>>, %arg3: memref<1x32xf32, #tpu.memory_space<vmem>>, %arg4: memref<32x192xbf16, #tpu.memory_space<vmem>>, %arg5: memref<64x32xbf16, #tpu.memory_space<vmem>>, %arg6: memref<1x32xf32, #tpu.memory_space<vmem>>, %arg7: memref<8x32xf32, #tpu.memory_space<vmem>>, %arg8: memref<8x192xbf16, #tpu.memory_space<vmem>>, %arg9: memref<8x64xf32, #tpu.memory_space<vmem>>) attributes {dimension_semantics = [#tpu.dimension_semantics<parallel>], iteration_bounds = array<i64: 2>, scalar_prefetch = 0 : i64, scratch_operands = 2 : i64, tpu.core_type = #tpu.core_type<tc>, window_params = [{transform_indices = @transform_0, window_bounds = array<i64: 8, 32>}, {pipeline_mode = #tpu.pipeline_mode<synchronous>, transform_indices = @transform_1, window_bounds = array<i64: 1, 32>}, {pipeline_mode = #tpu.pipeline_mode<synchronous>, transform_indices = @transform_2, window_bounds = array<i64: 1, 32>}, {pipeline_mode = #tpu.pipeline_mode<synchronous>, transform_indices = @transform_3, window_bounds = array<i64: 32, 192>}, {pipeline_mode = #tpu.pipeline_mode<synchronous>, transform_indices = @transform_4, window_bounds = array<i64: 64, 32>}, {pipeline_mode = #tpu.pipeline_mode<synchronous>, transform_indices = @transform_5, window_bounds = array<i64: 1, 32>}, {transform_indices = @transform_6, window_bounds = array<i64: 8, 32>}]} {
    %c0 = arith.constant 0 : index
    %c0_0 = arith.constant 0 : index
    %0 = vector.load %arg1[%c0, %c0_0] : memref<8x32xf32, #tpu.memory_space<vmem>>, vector<8x32xf32>
    %cst = arith.constant dense<0.000000e+00> : vector<8xf32>
    %1 = vector.multi_reduction <add>, %0, %cst [1] : vector<8x32xf32> to vector<8xf32>
    %2 = vector.shape_cast %1 : vector<8xf32> to vector<8x1xf32>
    %cst_1 = arith.constant 3.200000e+01 : f32
    %3 = vector.broadcast %cst_1 : f32 to vector<8x1xf32>
    %4 = arith.divf %2, %3 : vector<8x1xf32>
    %5 = vector.broadcast %4 : vector<8x1xf32> to vector<8x32xf32>
    %6 = arith.subf %0, %5 : vector<8x32xf32>
    %7 = arith.mulf %6, %6 : vector<8x32xf32>
    %cst_2 = arith.constant dense<0.000000e+00> : vector<8xf32>
    %8 = vector.multi_reduction <add>, %7, %cst_2 [1] : vector<8x32xf32> to vector<8xf32>
    %9 = vector.shape_cast %8 : vector<8xf32> to vector<8x1xf32>
    %cst_3 = arith.constant 3.200000e+01 : f32
    %10 = vector.broadcast %cst_3 : f32 to vector<8x1xf32>
    %11 = arith.divf %9, %10 : vector<8x1xf32>
    %cst_4 = arith.constant 9.99999974E-6 : f32
    %12 = vector.broadcast %cst_4 : f32 to vector<8x1xf32>
    %13 = arith.addf %11, %12 : vector<8x1xf32>
    %14 = math.rsqrt %13 : vector<8x1xf32>
    %15 = vector.broadcast %14 : vector<8x1xf32> to vector<8x32xf32>
    %16 = arith.mulf %6, %15 : vector<8x32xf32>
    %c0_5 = arith.constant 0 : index
    %c0_6 = arith.constant 0 : index
    %17 = vector.load %arg2[%c0_5, %c0_6] : memref<1x32xf32, #tpu.memory_space<vmem>>, vector<1x32xf32>
    %18 = vector.shape_cast %17 : vector<1x32xf32> to vector<32xf32>
    %19 = vector.shape_cast %18 : vector<32xf32> to vector<1x32xf32>
    %20 = vector.broadcast %19 : vector<1x32xf32> to vector<8x32xf32>
    %21 = arith.mulf %16, %20 : vector<8x32xf32>
    %c0_7 = arith.constant 0 : index
    %c0_8 = arith.constant 0 : index
    %22 = vector.load %arg3[%c0_7, %c0_8] : memref<1x32xf32, #tpu.memory_space<vmem>>, vector<1x32xf32>
    %23 = vector.shape_cast %22 : vector<1x32xf32> to vector<32xf32>
    %24 = vector.shape_cast %23 : vector<32xf32> to vector<1x32xf32>
    %25 = vector.broadcast %24 : vector<1x32xf32> to vector<8x32xf32>
    %26 = arith.addf %21, %25 : vector<8x32xf32>
    %27 = arith.truncf %26 : vector<8x32xf32> to vector<8x32xbf16>
    %c0_9 = arith.constant 0 : index
    %c0_10 = arith.constant 0 : index
    %28 = vector.load %arg4[%c0_9, %c0_10] : memref<32x192xbf16, #tpu.memory_space<vmem>>, vector<32x192xbf16>
    %cst_11 = arith.constant dense<0.000000e+00> : vector<8x192xf32>
    %29 = tpu.matmul %27, %28, %cst_11 {dimension_numbers = #tpu.dot_dimension_numbers<[1], [0], [0], [1], [0, 0, 1, 1], [], []>} : vector<8x32xbf16>, vector<32x192xbf16>, vector<8x192xf32> -> vector<8x192xf32>
    %30 = arith.truncf %29 : vector<8x192xf32> to vector<8x192xbf16>
    %c0_12 = arith.constant 0 : index
    %c0_13 = arith.constant 0 : index
    %31 = vector.load %arg8[%c0_12, %c0_13] : memref<8x192xbf16, #tpu.memory_space<vmem>>, vector<8x192xbf16>
    tpu.vector_store %arg8[%c0_12, %c0_13], %30 {strides = array<i32>} : memref<8x192xbf16, #tpu.memory_space<vmem>>, vector<8x192xbf16>,
    %c0_i32 = arith.constant 0 : i32
    %c8_i32 = arith.constant 8 : i32
    %32 = arith.muli %c0_i32, %c8_i32 : i32
    %33 = tpu.assume_multiple %32, 8 : i32
    %34 = arith.index_cast %33 : i32 to index
    %c0_14 = arith.constant 0 : index
    %35 = vector.load %arg8[%34, %c0_14] : memref<8x192xbf16, #tpu.memory_space<vmem>>, vector<8x16xbf16>
    %36 = arith.index_cast %33 : i32 to index
    %c64 = arith.constant 64 : index
    %37 = vector.load %arg8[%36, %c64] : memref<8x192xbf16, #tpu.memory_space<vmem>>, vector<8x16xbf16>
    %38 = arith.index_cast %33 : i32 to index
    %c128 = arith.constant 128 : index
    %39 = vector.load %arg8[%38, %c128] : memref<8x192xbf16, #tpu.memory_space<vmem>>, vector<8x16xbf16>
    %cst_15 = arith.constant dense<0.000000e+00> : vector<8x8xf32>
    %40 = tpu.matmul %35, %37, %cst_15 {dimension_numbers = #tpu.dot_dimension_numbers<[1], [1], [0], [0], [0, 0, 1, 0], [], []>} : vector<8x16xbf16>, vector<8x16xbf16>, vector<8x8xf32> -> vector<8x8xf32>
    %cst_16 = arith.constant dense<0xFF800000> : vector<8xf32>
    %41 = vector.multi_reduction <maximumf>, %40, %cst_16 [1] : vector<8x8xf32> to vector<8xf32>
    %42 = vector.shape_cast %41 : vector<8xf32> to vector<8x1xf32>
    %43 = vector.broadcast %42 : vector<8x1xf32> to vector<8x8xf32>
    %44 = arith.subf %40, %43 : vector<8x8xf32>
    %45 = math.exp %44 : vector<8x8xf32>
    %cst_17 = arith.constant dense<0.000000e+00> : vector<8xf32>
    %46 = vector.multi_reduction <add>, %45, %cst_17 [1] : vector<8x8xf32> to vector<8xf32>
    %47 = vector.shape_cast %46 : vector<8xf32> to vector<8x1xf32>
    %48 = arith.truncf %45 : vector<8x8xf32> to vector<8x8xbf16>
    %cst_18 = arith.constant dense<0.000000e+00> : vector<8x16xf32>
    %49 = tpu.matmul %48, %39, %cst_18 {dimension_numbers = #tpu.dot_dimension_numbers<[1], [0], [0], [1], [0, 0, 1, 1], [], []>} : vector<8x8xbf16>, vector<8x16xbf16>, vector<8x16xf32> -> vector<8x16xf32>
    %50 = tpu.reciprocal %47 {approx = true} : vector<8x1xf32> -> vector<8x1xf32>
    %51 = vector.broadcast %50 : vector<8x1xf32> to vector<8x16xf32>
    %52 = arith.mulf %49, %51 : vector<8x16xf32>
    %53 = arith.index_cast %33 : i32 to index
    %c0_19 = arith.constant 0 : index
    %54 = vector.load %arg9[%53, %c0_19] : memref<8x64xf32, #tpu.memory_space<vmem>>, vector<8x16xf32>
    tpu.vector_store %arg9[%53, %c0_19], %52 {strides = array<i32>} : memref<8x64xf32, #tpu.memory_space<vmem>>, vector<8x16xf32>,
    %55 = arith.index_cast %33 : i32 to index
    %c16 = arith.constant 16 : index
    %56 = vector.load %arg8[%55, %c16] : memref<8x192xbf16, #tpu.memory_space<vmem>>, vector<8x16xbf16>
    %57 = arith.index_cast %33 : i32 to index
    %c80 = arith.constant 80 : index
    %58 = vector.load %arg8[%57, %c80] : memref<8x192xbf16, #tpu.memory_space<vmem>>, vector<8x16xbf16>
    %59 = arith.index_cast %33 : i32 to index
    %c144 = arith.constant 144 : index
    %60 = vector.load %arg8[%59, %c144] : memref<8x192xbf16, #tpu.memory_space<vmem>>, vector<8x16xbf16>
    %cst_20 = arith.constant dense<0.000000e+00> : vector<8x8xf32>
    %61 = tpu.matmul %56, %58, %cst_20 {dimension_numbers = #tpu.dot_dimension_numbers<[1], [1], [0], [0], [0, 0, 1, 0], [], []>} : vector<8x16xbf16>, vector<8x16xbf16>, vector<8x8xf32> -> vector<8x8xf32>
    %cst_21 = arith.constant dense<0xFF800000> : vector<8xf32>
    %62 = vector.multi_reduction <maximumf>, %61, %cst_21 [1] : vector<8x8xf32> to vector<8xf32>
    %63 = vector.shape_cast %62 : vector<8xf32> to vector<8x1xf32>
    %64 = vector.broadcast %63 : vector<8x1xf32> to vector<8x8xf32>
    %65 = arith.subf %61, %64 : vector<8x8xf32>
    %66 = math.exp %65 : vector<8x8xf32>
    %cst_22 = arith.constant dense<0.000000e+00> : vector<8xf32>
    %67 = vector.multi_reduction <add>, %66, %cst_22 [1] : vector<8x8xf32> to vector<8xf32>
    %68 = vector.shape_cast %67 : vector<8xf32> to vector<8x1xf32>
    %69 = arith.truncf %66 : vector<8x8xf32> to vector<8x8xbf16>
    %cst_23 = arith.constant dense<0.000000e+00> : vector<8x16xf32>
    %70 = tpu.matmul %69, %60, %cst_23 {dimension_numbers = #tpu.dot_dimension_numbers<[1], [0], [0], [1], [0, 0, 1, 1], [], []>} : vector<8x8xbf16>, vector<8x16xbf16>, vector<8x16xf32> -> vector<8x16xf32>
    %71 = tpu.reciprocal %68 {approx = true} : vector<8x1xf32> -> vector<8x1xf32>
    %72 = vector.broadcast %71 : vector<8x1xf32> to vector<8x16xf32>
    %73 = arith.mulf %70, %72 : vector<8x16xf32>
    %74 = arith.index_cast %33 : i32 to index
    %c16_24 = arith.constant 16 : index
    %75 = vector.load %arg9[%74, %c16_24] : memref<8x64xf32, #tpu.memory_space<vmem>>, vector<8x16xf32>
    tpu.vector_store %arg9[%74, %c16_24], %73 {strides = array<i32>} : memref<8x64xf32, #tpu.memory_space<vmem>>, vector<8x16xf32>,
    %76 = arith.index_cast %33 : i32 to index
    %c32 = arith.constant 32 : index
    %77 = vector.load %arg8[%76, %c32] : memref<8x192xbf16, #tpu.memory_space<vmem>>, vector<8x16xbf16>
    %78 = arith.index_cast %33 : i32 to index
    %c96 = arith.constant 96 : index
    %79 = vector.load %arg8[%78, %c96] : memref<8x192xbf16, #tpu.memory_space<vmem>>, vector<8x16xbf16>
    %80 = arith.index_cast %33 : i32 to index
    %c160 = arith.constant 160 : index
    %81 = vector.load %arg8[%80, %c160] : memref<8x192xbf16, #tpu.memory_space<vmem>>, vector<8x16xbf16>
    %cst_25 = arith.constant dense<0.000000e+00> : vector<8x8xf32>
    %82 = tpu.matmul %77, %79, %cst_25 {dimension_numbers = #tpu.dot_dimension_numbers<[1], [1], [0], [0], [0, 0, 1, 0], [], []>} : vector<8x16xbf16>, vector<8x16xbf16>, vector<8x8xf32> -> vector<8x8xf32>
    %cst_26 = arith.constant dense<0xFF800000> : vector<8xf32>
    %83 = vector.multi_reduction <maximumf>, %82, %cst_26 [1] : vector<8x8xf32> to vector<8xf32>
    %84 = vector.shape_cast %83 : vector<8xf32> to vector<8x1xf32>
    %85 = vector.broadcast %84 : vector<8x1xf32> to vector<8x8xf32>
    %86 = arith.subf %82, %85 : vector<8x8xf32>
    %87 = math.exp %86 : vector<8x8xf32>
    %cst_27 = arith.constant dense<0.000000e+00> : vector<8xf32>
    %88 = vector.multi_reduction <add>, %87, %cst_27 [1] : vector<8x8xf32> to vector<8xf32>
    %89 = vector.shape_cast %88 : vector<8xf32> to vector<8x1xf32>
    %90 = arith.truncf %87 : vector<8x8xf32> to vector<8x8xbf16>
    %cst_28 = arith.constant dense<0.000000e+00> : vector<8x16xf32>
    %91 = tpu.matmul %90, %81, %cst_28 {dimension_numbers = #tpu.dot_dimension_numbers<[1], [0], [0], [1], [0, 0, 1, 1], [], []>} : vector<8x8xbf16>, vector<8x16xbf16>, vector<8x16xf32> -> vector<8x16xf32>
    %92 = tpu.reciprocal %89 {approx = true} : vector<8x1xf32> -> vector<8x1xf32>
    %93 = vector.broadcast %92 : vector<8x1xf32> to vector<8x16xf32>
    %94 = arith.mulf %91, %93 : vector<8x16xf32>
    %95 = arith.index_cast %33 : i32 to index
    %c32_29 = arith.constant 32 : index
    %96 = vector.load %arg9[%95, %c32_29] : memref<8x64xf32, #tpu.memory_space<vmem>>, vector<8x16xf32>
    tpu.vector_store %arg9[%95, %c32_29], %94 {strides = array<i32>} : memref<8x64xf32, #tpu.memory_space<vmem>>, vector<8x16xf32>,
    %97 = arith.index_cast %33 : i32 to index
    %c48 = arith.constant 48 : index
    %98 = vector.load %arg8[%97, %c48] : memref<8x192xbf16, #tpu.memory_space<vmem>>, vector<8x16xbf16>
    %99 = arith.index_cast %33 : i32 to index
    %c112 = arith.constant 112 : index
    %100 = vector.load %arg8[%99, %c112] : memref<8x192xbf16, #tpu.memory_space<vmem>>, vector<8x16xbf16>
    %101 = arith.index_cast %33 : i32 to index
    %c176 = arith.constant 176 : index
    %102 = vector.load %arg8[%101, %c176] : memref<8x192xbf16, #tpu.memory_space<vmem>>, vector<8x16xbf16>
    %cst_30 = arith.constant dense<0.000000e+00> : vector<8x8xf32>
    %103 = tpu.matmul %98, %100, %cst_30 {dimension_numbers = #tpu.dot_dimension_numbers<[1], [1], [0], [0], [0, 0, 1, 0], [], []>} : vector<8x16xbf16>, vector<8x16xbf16>, vector<8x8xf32> -> vector<8x8xf32>
    %cst_31 = arith.constant dense<0xFF800000> : vector<8xf32>
    %104 = vector.multi_reduction <maximumf>, %103, %cst_31 [1] : vector<8x8xf32> to vector<8xf32>
    %105 = vector.shape_cast %104 : vector<8xf32> to vector<8x1xf32>
    %106 = vector.broadcast %105 : vector<8x1xf32> to vector<8x8xf32>
    %107 = arith.subf %103, %106 : vector<8x8xf32>
    %108 = math.exp %107 : vector<8x8xf32>
    %cst_32 = arith.constant dense<0.000000e+00> : vector<8xf32>
    %109 = vector.multi_reduction <add>, %108, %cst_32 [1] : vector<8x8xf32> to vector<8xf32>
    %110 = vector.shape_cast %109 : vector<8xf32> to vector<8x1xf32>
    %111 = arith.truncf %108 : vector<8x8xf32> to vector<8x8xbf16>
    %cst_33 = arith.constant dense<0.000000e+00> : vector<8x16xf32>
    %112 = tpu.matmul %111, %102, %cst_33 {dimension_numbers = #tpu.dot_dimension_numbers<[1], [0], [0], [1], [0, 0, 1, 1], [], []>} : vector<8x8xbf16>, vector<8x16xbf16>, vector<8x16xf32> -> vector<8x16xf32>
    %113 = tpu.reciprocal %110 {approx = true} : vector<8x1xf32> -> vector<8x1xf32>
    %114 = vector.broadcast %113 : vector<8x1xf32> to vector<8x16xf32>
    %115 = arith.mulf %112, %114 : vector<8x16xf32>
    %116 = arith.index_cast %33 : i32 to index
    %c48_34 = arith.constant 48 : index
    %117 = vector.load %arg9[%116, %c48_34] : memref<8x64xf32, #tpu.memory_space<vmem>>, vector<8x16xf32>
    tpu.vector_store %arg9[%116, %c48_34], %115 {strides = array<i32>} : memref<8x64xf32, #tpu.memory_space<vmem>>, vector<8x16xf32>,
    %c1_i32 = arith.constant 1 : i32
    %c0_35 = arith.constant 0 : index
    %c0_36 = arith.constant 0 : index
    %118 = vector.load %arg9[%c0_35, %c0_36] : memref<8x64xf32, #tpu.memory_space<vmem>>, vector<8x64xf32>
    %119 = arith.truncf %118 : vector<8x64xf32> to vector<8x64xbf16>
    %c0_37 = arith.constant 0 : index
    %c0_38 = arith.constant 0 : index
    %120 = vector.load %arg5[%c0_37, %c0_38] : memref<64x32xbf16, #tpu.memory_space<vmem>>, vector<64x32xbf16>
    %cst_39 = arith.constant dense<0.000000e+00> : vector<8x32xf32>
    %121 = tpu.matmul %119, %120, %cst_39 {dimension_numbers = #tpu.dot_dimension_numbers<[1], [0], [0], [1], [0, 0, 1, 1], [], []>} : vector<8x64xbf16>, vector<64x32xbf16>, vector<8x32xf32> -> vector<8x32xf32>
    %c0_40 = arith.constant 0 : index
    %c0_41 = arith.constant 0 : index
    %122 = vector.load %arg6[%c0_40, %c0_41] : memref<1x32xf32, #tpu.memory_space<vmem>>, vector<1x32xf32>
    %123 = vector.shape_cast %122 : vector<1x32xf32> to vector<32xf32>
    %124 = vector.shape_cast %123 : vector<32xf32> to vector<1x32xf32>
    %125 = vector.broadcast %124 : vector<1x32xf32> to vector<8x32xf32>
    %126 = arith.addf %121, %125 : vector<8x32xf32>
    %c0_42 = arith.constant 0 : index
    %c0_43 = arith.constant 0 : index
    %127 = vector.load %arg7[%c0_42, %c0_43] : memref<8x32xf32, #tpu.memory_space<vmem>>, vector<8x32xf32>
    tpu.vector_store %arg7[%c0_42, %c0_43], %126 {strides = array<i32>} : memref<8x32xf32, #tpu.memory_space<vmem>>, vector<8x32xf32>,
    return
  }
  func.func @transform_0(%arg0: i32) -> (i32, i32) {
    %c0_i32 = arith.constant 0 : i32
    %c0_i32_0 = arith.constant 0 : i32
    return %arg0, %c0_i32 : i32, i32
  }
  func.func @transform_1(%arg0: i32) -> (i32, i32) {
    %c0_i32 = arith.constant 0 : i32
    %c0_i32_0 = arith.constant 0 : i32
    %c0_i32_1 = arith.constant 0 : i32
    return %c0_i32, %c0_i32_0 : i32, i32
  }
  func.func @transform_2(%arg0: i32) -> (i32, i32) {
    %c0_i32 = arith.constant 0 : i32
    %c0_i32_0 = arith.constant 0 : i32
    %c0_i32_1 = arith.constant 0 : i32
    return %c0_i32, %c0_i32_0 : i32, i32
  }
  func.func @transform_3(%arg0: i32) -> (i32, i32) {
    %c0_i32 = arith.constant 0 : i32
    %c0_i32_0 = arith.constant 0 : i32
    %c0_i32_1 = arith.constant 0 : i32
    return %c0_i32, %c0_i32_0 : i32, i32
  }
  func.func @transform_4(%arg0: i32) -> (i32, i32) {
    %c0_i32 = arith.constant 0 : i32
    %c0_i32_0 = arith.constant 0 : i32
    %c0_i32_1 = arith.constant 0 : i32
    return %c0_i32, %c0_i32_0 : i32, i32
  }
  func.func @transform_5(%arg0: i32) -> (i32, i32) {
    %c0_i32 = arith.constant 0 : i32
    %c0_i32_0 = arith.constant 0 : i32
    %c0_i32_1 = arith.constant 0 : i32
    return %c0_i32, %c0_i32_0 : i32, i32
  }
  func.func @transform_6(%arg0: i32) -> (i32, i32) {
    %c0_i32 = arith.constant 0 : i32
    %c0_i32_0 = arith.constant 0 : i32
    return %arg0, %c0_i32 : i32, i32
  }
}

</mosaic_0001>

<llo_original>
// kernel: tpu_custom_call.1
$region0: #{tpu_custom_call.1}
  #allocation0 [shape = 'u32[]', space=smem, size = 0x4, offset = 0x4, fixed_abs, tag = 'smem constant byte address 0x4 - core index']
  #allocation1 [shape = 'u32[144,128]{1,0:T(1,128)}', space=vmem, size = 0x12000, scoped, tag = 'internal scratch']
  #allocation2 [shape = 'bf16[8,192]{1,0:T(8,128)(2,1)}', space=vmem, size = 0x1000, scoped, tag = 'scratch operand']
  #allocation3 [shape = 'f32[8,64]{1,0:T(8,128)}', space=vmem, size = 0x1000, scoped, tag = 'scratch operand']
  %s0 = inlined_call_operand.vmem [shape: f32[16,32], index: 0, kind: input, shape index: {}]
  %s1 = inlined_call_operand.vmem [shape: f32[1,32], index: 1, kind: input, shape index: {}]
  %s2 = inlined_call_operand.vmem [shape: f32[1,32], index: 2, kind: input, shape index: {}]
  %s3 = inlined_call_operand.vmem [shape: bf16[32,192], index: 3, kind: input, shape index: {}]
  %s4 = inlined_call_operand.vmem [shape: bf16[64,32], index: 4, kind: input, shape index: {}]
  %s5 = inlined_call_operand.vmem [shape: f32[1,32], index: 5, kind: input, shape index: {}]
  %s6 = inlined_call_operand.hbm [shape: f32[16,32], index: 6, kind: output, shape index: {}]
  %s7 = sld [smem:[#allocation0]]
  $region57: #{tpu_custom_call.1} parent=0
    _
  %s9 = ssub.s32 1, %s7
  %s10 = scalar_select 0, %s9, %s7
  $region1: #{tpu_custom_call.1} parent=0
    #allocation4 [shape = 'u8[8192]{0}', space=vmem, size = 0x2000, scoped, tag = 'output window, operand 0']
    #allocation5 [shape = 's32[2]{0}', space=sflag, size = 0x8, scoped, tag = 'scoped memory for tpu_custom_call.1']
    %11 = vsyncpa [#allocation5], 0
    %s12 = scalar_lea.sflag [#allocation5], 1
    %13 = vsyncpa %s12, 0
    loop: start=0, step=1, limit=4
    $region2: #{tpu_custom_call.1} parent=1 // loop_pre_header
      _
    $region3: #{tpu_custom_call.1} parent=1 // loop_header
      %s15 = sphi 0, %s19
      %p16 = scmp.ge.s32.totalorder %s15, 4
      %s25 = sphi 0, %s27
      %s28 = sphi 0, %s25
      %s29 = sphi 0, %s28
      %s45 = sphi 0, %s29
      %s49 = sphi 0, %s49
      %s51 = sphi 0, %s49
      %s52 = sphi 0, %s51
      %s66 = sphi 0, %s52
      %s70 = sphi 0, %s70
      %s72 = sphi 0, %s70
      %s73 = sphi 0, %s72
      %s87 = sphi 0, %s73
      %s91 = sphi 0, %s91
      %s93 = sphi 0, %s91
      %s94 = sphi 0, %s93
      %s108 = sphi 0, %s94
      %s112 = sphi 0, %s112
      %s114 = sphi 0, %s112
      %s115 = sphi 0, %s114
      %s129 = sphi 0, %s115
      %s133 = sphi 0, %s133
      %s135 = sphi 0, %s133
      %s136 = sphi 0, %s135
      %s150 = sphi 0, %s136
      %s156 = sphi 0, %s158
      %s159 = sphi 0, %s156
      %s160 = sphi 0, %s159
      %s176 = sphi 0, %s160
    $region4: #{tpu_custom_call.1} parent=1 // loop_header_branch
      %18 = sbr.rel (%p16) target = $region8
    $region5: #{tpu_custom_call.1} parent=1 // loop_body
      %s20 = ssub.s32 %s15, 1
      %s21 = ssub.s32 %s15, 2
      %s22 = sadd.s32 %s15, 1
      %s23 = ssub.s32 %s15, %s22
      %p24 = scmp.eq.s32.totalorder %s23, 0
      %s26 = sadd.s32 %s25, 1
      %s27 = scalar_select %p24, %s25, %s26
      %p30 = pneg %p24
      %p31 = scmp.eq.s32.totalorder %s15, 1
      %p32 = por %p30, %p31
      %p33 = scmp.ne.s32.totalorder %s25, %s28
      %p34 = scmp.eq.s32.totalorder %s15, 0
      %p35 = por %p33, %p34
      %p36 = scmp.ne.s32.totalorder %s25, %s28
      %p37 = scmp.eq.s32.totalorder %s20, 1
      %p38 = por %p36, %p37
      %p39 = scmp.ne.s32.totalorder %s28, %s29
      %p40 = scmp.eq.s32.totalorder %s20, 0
      %p41 = por %p39, %p40
      %p42 = scmp.ne.s32.totalorder %s28, %s29
      %p43 = scmp.eq.s32.totalorder %s21, 1
      %p44 = por %p42, %p43
      %p46 = scmp.ne.s32.totalorder %s29, %s45
      %p47 = scmp.eq.s32.totalorder %s21, 0
      %p48 = por %p46, %p47
      %s50 = sadd.s32 %s49, 1
      %p53 = scmp.eq.s32.totalorder %s15, 1
      %p54 = scmp.ne.s32.totalorder %s49, %s51
      %p55 = scmp.eq.s32.totalorder %s15, 0
      %p56 = por %p54, %p55
      %p57 = scmp.ne.s32.totalorder %s49, %s51
      %p58 = scmp.eq.s32.totalorder %s20, 1
      %p59 = por %p57, %p58
      %p60 = scmp.ne.s32.totalorder %s51, %s52
      %p61 = scmp.eq.s32.totalorder %s20, 0
      %p62 = por %p60, %p61
      %p63 = scmp.ne.s32.totalorder %s51, %s52
      %p64 = scmp.eq.s32.totalorder %s21, 1
      %p65 = por %p63, %p64
      %p67 = scmp.ne.s32.totalorder %s52, %s66
      %p68 = scmp.eq.s32.totalorder %s21, 0
      %p69 = por %p67, %p68
      %s71 = sadd.s32 %s70, 1
      %p74 = scmp.eq.s32.totalorder %s15, 1
      %p75 = scmp.ne.s32.totalorder %s70, %s72
      %p76 = scmp.eq.s32.totalorder %s15, 0
      %p77 = por %p75, %p76
      %p78 = scmp.ne.s32.totalorder %s70, %s72
      %p79 = scmp.eq.s32.totalorder %s20, 1
      %p80 = por %p78, %p79
      %p81 = scmp.ne.s32.totalorder %s72, %s73
      %p82 = scmp.eq.s32.totalorder %s20, 0
      %p83 = por %p81, %p82
      %p84 = scmp.ne.s32.totalorder %s72, %s73
      %p85 = scmp.eq.s32.totalorder %s21, 1
      %p86 = por %p84, %p85
      %p88 = scmp.ne.s32.totalorder %s73, %s87
      %p89 = scmp.eq.s32.totalorder %s21, 0
      %p90 = por %p88, %p89
      %s92 = sadd.s32 %s91, 1
      %p95 = scmp.eq.s32.totalorder %s15, 1
      %p96 = scmp.ne.s32.totalorder %s91, %s93
      %p97 = scmp.eq.s32.totalorder %s15, 0
      %p98 = por %p96, %p97
      %p99 = scmp.ne.s32.totalorder %s91, %s93
      %p100 = scmp.eq.s32.totalorder %s20, 1
      %p101 = por %p99, %p100
      %p102 = scmp.ne.s32.totalorder %s93, %s94
      %p103 = scmp.eq.s32.totalorder %s20, 0
      %p104 = por %p102, %p103
      %p105 = scmp.ne.s32.totalorder %s93, %s94
      %p106 = scmp.eq.s32.totalorder %s21, 1
      %p107 = por %p105, %p106
      %p109 = scmp.ne.s32.totalorder %s94, %s108
      %p110 = scmp.eq.s32.totalorder %s21, 0
      %p111 = por %p109, %p110
      %s113 = sadd.s32 %s112, 1
      %p116 = scmp.eq.s32.totalorder %s15, 1
      %p117 = scmp.ne.s32.totalorder %s112, %s114
      %p118 = scmp.eq.s32.totalorder %s15, 0
      %p119 = por %p117, %p118
      %p120 = scmp.ne.s32.totalorder %s112, %s114
      %p121 = scmp.eq.s32.totalorder %s20, 1
      %p122 = por %p120, %p121
      %p123 = scmp.ne.s32.totalorder %s114, %s115
      %p124 = scmp.eq.s32.totalorder %s20, 0
      %p125 = por %p123, %p124
      %p126 = scmp.ne.s32.totalorder %s114, %s115
      %p127 = scmp.eq.s32.totalorder %s21, 1
      %p128 = por %p126, %p127
      %p130 = scmp.ne.s32.totalorder %s115, %s129
      %p131 = scmp.eq.s32.totalorder %s21, 0
      %p132 = por %p130, %p131
      %s134 = sadd.s32 %s133, 1
      %p137 = scmp.eq.s32.totalorder %s15, 1
      %p138 = scmp.ne.s32.totalorder %s133, %s135
      %p139 = scmp.eq.s32.totalorder %s15, 0
      %p140 = por %p138, %p139
      %p141 = scmp.ne.s32.totalorder %s133, %s135
      %p142 = scmp.eq.s32.totalorder %s20, 1
      %p143 = por %p141, %p142
      %p144 = scmp.ne.s32.totalorder %s135, %s136
      %p145 = scmp.eq.s32.totalorder %s20, 0
      %p146 = por %p144, %p145
      %p147 = scmp.ne.s32.totalorder %s135, %s136
      %p148 = scmp.eq.s32.totalorder %s21, 1
      %p149 = por %p147, %p148
      %p151 = scmp.ne.s32.totalorder %s136, %s150
      %p152 = scmp.eq.s32.totalorder %s21, 0
      %p153 = por %p151, %p152
      %s154 = ssub.s32 %s15, %s22
      %p155 = scmp.eq.s32.totalorder %s154, 0
      %s157 = sadd.s32 %s156, 1
      %s158 = scalar_select %p155, %s156, %s157
      %p161 = pneg %p155
      %p162 = scmp.eq.s32.totalorder %s15, 1
      %p163 = por %p161, %p162
      %p164 = scmp.ne.s32.totalorder %s156, %s159
      %p165 = scmp.eq.s32.totalorder %s15, 0
      %p166 = por %p164, %p165
      %p167 = scmp.ne.s32.totalorder %s156, %s159
      %p168 = scmp.eq.s32.totalorder %s20, 1
      %p169 = por %p167, %p168
      %p170 = scmp.ne.s32.totalorder %s159, %s160
      %p171 = scmp.eq.s32.totalorder %s20, 0
      %p172 = por %p170, %p171
      %p173 = scmp.ne.s32.totalorder %s159, %s160
      %p174 = scmp.eq.s32.totalorder %s21, 1
      %p175 = por %p173, %p174
      %p177 = scmp.ne.s32.totalorder %s160, %s176
      %p178 = scmp.eq.s32.totalorder %s21, 0
      %p179 = por %p177, %p178
      %p180 = scmp.le.s32.totalorder 1, %s15
      %p181 = scmp.lt.s32.totalorder %s15, 3
      %p182 = pnand %p180, %p181
      %p183 = pneg %p182
      // Predicated region
      $region9: #{tpu_custom_call.1} parent=5 // pred_check
        _
      $region10: #{tpu_custom_call.1} parent=5 // pred_check_branch
        %185 = sbr.rel (%p182) target = $region12
      $region11: #{tpu_custom_call.1} parent=5 // pred_region
        %s186 = ssub.s32 %s15, 1
        // Predicated region
        $region13: #{tpu_custom_call.1} parent=11 // pred_check
          %p187 = pneg %p62
        $region14: #{tpu_custom_call.1} parent=11 // pred_check_branch
          %189 = sbr.rel (%p187) target = $region16
        $region15: #{tpu_custom_call.1} parent=11 // pred_region
          _
        $region16: #{tpu_custom_call.1} parent=11 // pred_fallthru
          _
        // Predicated region
        $region17: #{tpu_custom_call.1} parent=11 // pred_check
          %p190 = pneg %p83
        $region18: #{tpu_custom_call.1} parent=11 // pred_check_branch
          %192 = sbr.rel (%p190) target = $region20
        $region19: #{tpu_custom_call.1} parent=11 // pred_region
          _
        $region20: #{tpu_custom_call.1} parent=11 // pred_fallthru
          _
        // Predicated region
        $region21: #{tpu_custom_call.1} parent=11 // pred_check
          %p193 = pneg %p104
        $region22: #{tpu_custom_call.1} parent=11 // pred_check_branch
          %195 = sbr.rel (%p193) target = $region24
        $region23: #{tpu_custom_call.1} parent=11 // pred_region
          _
        $region24: #{tpu_custom_call.1} parent=11 // pred_fallthru
          _
        // Predicated region
        $region25: #{tpu_custom_call.1} parent=11 // pred_check
          %p196 = pneg %p125
        $region26: #{tpu_custom_call.1} parent=11 // pred_check_branch
          %198 = sbr.rel (%p196) target = $region28
        $region27: #{tpu_custom_call.1} parent=11 // pred_region
          _
        $region28: #{tpu_custom_call.1} parent=11 // pred_fallthru
          _
        // Predicated region
        $region29: #{tpu_custom_call.1} parent=11 // pred_check
          %p199 = pneg %p146
        $region30: #{tpu_custom_call.1} parent=11 // pred_check_branch
          %201 = sbr.rel (%p199) target = $region32
        $region31: #{tpu_custom_call.1} parent=11 // pred_region
          _
        $region32: #{tpu_custom_call.1} parent=11 // pred_fallthru
          _
      $region12: #{tpu_custom_call.1} parent=5 // pred_fallthru
        _
      %p202 = scmp.lt.s32.totalorder %s15, 2
      // Predicated region
      $region33: #{tpu_custom_call.1} parent=5 // pred_check
        %p203 = pneg %p202
      $region34: #{tpu_custom_call.1} parent=5 // pred_check_branch
        %205 = sbr.rel (%p203) target = $region36
      $region35: #{tpu_custom_call.1} parent=5 // pred_region
        // Predicated region
        $region37: #{tpu_custom_call.1} parent=35 // pred_check
          %p206 = pneg %p35
        $region38: #{tpu_custom_call.1} parent=35 // pred_check_branch
          %208 = sbr.rel (%p206) target = $region40
        $region39: #{tpu_custom_call.1} parent=35 // pred_region
          %p209 = scmp.lt.s32.totalorder %s15, 1
          %s210 = scalar_select %p209, %s15, 1
          %s211 = smul.addr %s210, 8
          %s212 = scalar_lea.vmem %s0, %s211
        $region40: #{tpu_custom_call.1} parent=35 // pred_fallthru
          _
      $region36: #{tpu_custom_call.1} parent=5 // pred_fallthru
        _
      %p213 = scmp.le.s32.totalorder 1, %s15
      %p214 = scmp.lt.s32.totalorder %s15, 3
      %p215 = pnand %p213, %p214
      %p216 = pneg %p215
      // Predicated region
      $region41: #{tpu_custom_call.1} parent=5 // pred_check
        _
      $region42: #{tpu_custom_call.1} parent=5 // pred_check_branch
        %218 = sbr.rel (%p215) target = $region44
      $region43: #{tpu_custom_call.1} parent=5 // pred_region
        %s219 = ssub.s32 %s15, 1
        %p220 = scmp.lt.s32.totalorder %s20, 1
        %s221 = scalar_select %p220, %s20, 1
        %s222 = smul.addr %s221, 8
        %s223 = scalar_lea.vmem %s0, %s222
        %p224 = pneg %p41
        %p225 = pneg %p38
        %p226 = pneg %p62
        %p227 = pneg %p59
        %p228 = pneg %p83
        %p229 = pneg %p80
        %p230 = pneg %p104
        %p231 = pneg %p101
        %p232 = pneg %p125
        %p233 = pneg %p122
        %p234 = pneg %p146
        %p235 = pneg %p143
        %p236 = pneg %p172
        %p237 = pneg %p169
        %s238 = sand.u32 %s159, 1
        %s239 = scalar_lea.sflag [#allocation5], %s238
        %s240 = sand.u32 %s159, 1
        %s241 = smul.addr %s240, 8
        %s242 = scalar_lea.vmem [#allocation4], %s241
        %p243 = scmp.lt.s32.totalorder %s20, 1
        %s244 = scalar_select %p243, %s20, 1
        %s245 = smul.addr %s244, 8
        %s246 = scalar_lea.vmem %s0, %s245
        %v248 = vld [vmem:[%s246] sm:$0xff]
        %vm249 = vcmask 261120
        %v250 = vsel %vm249, %v248, 0.0
        %251 = vadd.xlane.f32.xlu0 %v250
        %v252 = vpop.xlane.xlu0 %251
        %v253 = vrcp.pop 32.0
        %v254 = vmul.f32 %v252, %v253
        %v255 = vsub.f32 %v248, %v254
        %v256 = vmul.f32 %v255, %v255
        %v257 = vsel %vm249, %v256, 0.0
        %258 = vadd.xlane.f32.xlu0 %v257
        %v259 = vpop.xlane.xlu0 %258
        %v260 = vmul.f32 %v259, %v253
        %v261 = vadd.f32 %v260, 1e-05
        %v262 = vrsqrt.pop %v261
        %v263 = vmul.f32 %v255, %v262
        %v264 = vld [vmem:[%s1] sm:$0x1]
        %v266 = vlaneseq
        %v267 = vshrl.u32 %v266, 7
        %v268 = vsub.s32 0, %v267
        %v269 = vrot.slane %v264, %v268
        %v271 = vmul.f32 %v263, %v269
        %v272 = vld [vmem:[%s2] sm:$0x1]
        %v274 = vlaneseq
        %v275 = vshrl.u32 %v274, 7
        %v276 = vsub.s32 0, %v275
        %v277 = vrot.slane %v272, %v276
        %v279 = vadd.f32 %v271, %v277
        %v280 = vpack.c.bf16 %v279, %v279
        %v281 = vld [vmem:[%s3] sm:$0xff]
        %v282 = vld [vmem:[%s3 + $0x8] sm:$0xff]
        %v283 = vld [vmem:[%s3 + $0x10] sm:$0xff]
        %v284 = vld [vmem:[%s3 + $0x18] sm:$0xff]
        %v289 = vunpack.c.l.b16 %v281
        %v290 = vunpack.c.h.b16 %v281
        %v291 = vunpack.c.l.b16 %v282
        %v292 = vunpack.c.h.b16 %v282
        %v293 = vunpack.c.l.b16 %v283
        %v294 = vunpack.c.h.b16 %v283
        %v295 = vunpack.c.l.b16 %v284
        %v296 = vunpack.c.h.b16 %v284
        %v297 = vpack.c.b16 %v291, %v289
        %v298 = vpack.c.b16 %v292, %v290
        %v299 = vpack.c.b16 %v295, %v293
        %v300 = vpack.c.b16 %v296, %v294
        %v306 = vsel %vm249, %v280, 0
        %308 = vmatprep.subr.bf16.mxu0 %v298
        %309 = vmatpush1.bf16.msra.mxu0 %v297
        %310 = vmatprep.subr.bf16.mxu0 %v300
        %311 = vmatpush1.bf16.msra.mxu0 %v299
        %312 = vmatprep.subr.bf16.mxu0 0
        %313 = vmatpush1.bf16.msra.mxu0 0
        %314 = vmatprep.subr.bf16.mxu0 0
        %315 = vmatpush1.bf16.msra.mxu0 0
        %316 = vmatprep.subr.bf16.mxu0 0
        %317 = vmatpush1.bf16.msra.mxu0 0
        %318 = vmatprep.subr.bf16.mxu0 0
        %319 = vmatpush1.bf16.msra.mxu0 0
        %320 = vmatprep.subr.bf16.mxu0 0
        %321 = vmatpush1.bf16.msra.mxu0 0
        %322 = vmatprep.subr.bf16.mxu0 0
        %323 = vmatpush1.bf16.msra.mxu0 0
        %324 = vmatprep.subr.bf16.mxu0 0
        %325 = vmatpush1.bf16.msra.mxu0 0
        %326 = vmatprep.subr.bf16.mxu0 0
        %327 = vmatpush1.bf16.msra.mxu0 0
        %328 = vmatprep.subr.bf16.mxu0 0
        %329 = vmatpush1.bf16.msra.mxu0 0
        %330 = vmatprep.subr.bf16.mxu0 0
        %331 = vmatpush1.bf16.msra.mxu0 0
        %332 = vmatprep.subr.bf16.mxu0 0
        %333 = vmatpush1.bf16.msra.mxu0 0
        %334 = vmatprep.subr.bf16.mxu0 0
        %335 = vmatpush1.bf16.msra.mxu0 0
        %336 = vmatprep.subr.bf16.mxu0 0
        %337 = vmatpush1.bf16.msra.mxu0 0
        %338 = vmatprep.subr.bf16.mxu0 0
        %339 = vmatpush1.bf16.msra.mxu0 0
        %340 = vmatprep.mubr.bf16.mxu0 0
        %341 = vmatmul.mubr.bf16.gmra.mrb[0].mxu0 %v306
        %v342 = vpop.f32.mrb[0].mxu0
        %v343 = vadd.f32 0.0, %v342
        %v344 = vpop.f32.mrb[0].mxu0
        %v345 = vadd.f32 0.0, %v344
        %v346 = vpop.f32.mrb[0].mxu0
        %v347 = vpop.f32.mrb[0].mxu0
        %348 = vdwg.mxu0
        %v349 = vpack.c.bf16 %v343, %v343
        %v350 = vpack.c.bf16 %v345, %v345
        %v353 = vunpack.c.l.b16 %v349
        %v354 = vunpack.c.l.b16 %v350
        %v355 = vpack.c.b16 %v354, %v353
        %vm357 = vcmask 1043456
        %vm358 = vcmask 523268
        %vm359 = vmor %vm358, %vm357
        %360 = vst.msk [vmem:[#allocation2] sm:$0xff] %vm359, %v355
        %s361 = smul.u32 0, 2
        %s362 = smul.addr %s361, 4
        %s363 = scalar_lea.vmem [#allocation2], %s362
        %v364 = vld [vmem:[%s363] sm:$0xf]
        %v365 = vld [vmem:[%s363 + $0x4] sm:$0xf]
        %v367 = vunpack.c.l.b16 %v364
        %v368 = vpack.c.b16 %v367, %v367
        %369 = vrot.lane.b32.xlu0 %v368, 64
        %v370 = vpop.permute.xlu0 %369
        %vm371 = vcmask 130048
        %v373 = vsel %vm371, %v364, 0
        %v376 = vsel %vm371, %v370, 0
        %378 = vmatprep.subr.bf16.mxu0 0
        %379 = vmatpush1.bf16.xpose.msra.mxu0 %v376
        %380 = vmatprep.subr.bf16.mxu0 0
        %381 = vmatpush1.bf16.xpose.msra.mxu0 0
        %382 = vmatprep.subr.bf16.mxu0 0
        %383 = vmatpush1.bf16.xpose.msra.mxu0 0
        %384 = vmatprep.subr.bf16.mxu0 0
        %385 = vmatpush1.bf16.xpose.msra.mxu0 0
        %386 = vmatprep.subr.bf16.mxu0 0
        %387 = vmatpush1.bf16.xpose.msra.mxu0 0
        %388 = vmatprep.subr.bf16.mxu0 0
        %389 = vmatpush1.bf16.xpose.msra.mxu0 0
        %390 = vmatprep.subr.bf16.mxu0 0
        %391 = vmatpush1.bf16.xpose.msra.mxu0 0
        %392 = vmatprep.subr.bf16.mxu0 0
        %393 = vmatpush1.bf16.xpose.msra.mxu0 0
        %394 = vmatprep.subr.bf16.mxu0 0
        %395 = vmatpush1.bf16.xpose.msra.mxu0 0
        %396 = vmatprep.subr.bf16.mxu0 0
        %397 = vmatpush1.bf16.xpose.msra.mxu0 0
        %398 = vmatprep.subr.bf16.mxu0 0
        %399 = vmatpush1.bf16.xpose.msra.mxu0 0
        %400 = vmatprep.subr.bf16.mxu0 0
        %401 = vmatpush1.bf16.xpose.msra.mxu0 0
        %402 = vmatprep.subr.bf16.mxu0 0
        %403 = vmatpush1.bf16.xpose.msra.mxu0 0
        %404 = vmatprep.subr.bf16.mxu0 0
        %405 = vmatpush1.bf16.xpose.msra.mxu0 0
        %406 = vmatprep.subr.bf16.mxu0 0
        %407 = vmatpush1.bf16.xpose.msra.mxu0 0
        %408 = vmatprep.subr.bf16.mxu0 0
        %409 = vmatpush1.bf16.xpose.msra.mxu0 0
        %410 = vmatprep.mubr.bf16.mxu0 0
        %411 = vmatmul.mubr.bf16.gmra.mrb[0].mxu0 %v373
        %v412 = vpop.f32.mrb[0].mxu0
        %v413 = vadd.f32 0.0, %v412
        %v414 = vpop.f32.mrb[0].mxu0
        %v415 = vpop.f32.mrb[0].mxu0
        %v416 = vpop.f32.mrb[0].mxu0
        %417 = vdwg.mxu0
        %vm418 = vcmask 64512
        %v419 = vsel %vm418, %v413, -inf
        %420 = vmax.xlane.f32.xlu0 %v419
        %v421 = vpop.xlane.xlu0 %420
        %v422 = vsub.f32 %v413, %v421
        %v423 = vmul.f32 %v422, 1.442695
        %v424 = vpow.pop %v423
        %v425 = vsel %vm418, %v424, 0.0
        %426 = vadd.xlane.f32.xlu0 %v425
        %v427 = vpop.xlane.xlu0 %426
        %v428 = vpack.c.bf16 %v424, %v424
        %v430 = vsel %vm418, %v428, 0
        %v433 = vsel %vm357, %v365, 0
        %435 = vmatprep.subr.bf16.mxu0 0
        %436 = vmatpush1.bf16.msra.mxu0 %v433
        %437 = vmatprep.subr.bf16.mxu0 0
        %438 = vmatpush1.bf16.msra.mxu0 0
        %439 = vmatprep.subr.bf16.mxu0 0
        %440 = vmatpush1.bf16.msra.mxu0 0
        %441 = vmatprep.subr.bf16.mxu0 0
        %442 = vmatpush1.bf16.msra.mxu0 0
        %443 = vmatprep.subr.bf16.mxu0 0
        %444 = vmatpush1.bf16.msra.mxu0 0
        %445 = vmatprep.subr.bf16.mxu0 0
        %446 = vmatpush1.bf16.msra.mxu0 0
        %447 = vmatprep.subr.bf16.mxu0 0
        %448 = vmatpush1.bf16.msra.mxu0 0
        %449 = vmatprep.subr.bf16.mxu0 0
        %450 = vmatpush1.bf16.msra.mxu0 0
        %451 = vmatprep.subr.bf16.mxu0 0
        %452 = vmatpush1.bf16.msra.mxu0 0
        %453 = vmatprep.subr.bf16.mxu0 0
        %454 = vmatpush1.bf16.msra.mxu0 0
        %455 = vmatprep.subr.bf16.mxu0 0
        %456 = vmatpush1.bf16.msra.mxu0 0
        %457 = vmatprep.subr.bf16.mxu0 0
        %458 = vmatpush1.bf16.msra.mxu0 0
        %459 = vmatprep.subr.bf16.mxu0 0
        %460 = vmatpush1.bf16.msra.mxu0 0
        %461 = vmatprep.subr.bf16.mxu0 0
        %462 = vmatpush1.bf16.msra.mxu0 0
        %463 = vmatprep.subr.bf16.mxu0 0
        %464 = vmatpush1.bf16.msra.mxu0 0
        %465 = vmatprep.subr.bf16.mxu0 0
        %466 = vmatpush1.bf16.msra.mxu0 0
        %467 = vmatprep.mubr.bf16.mxu0 0
        %468 = vmatmul.mubr.bf16.gmra.mrb[0].mxu0 %v430
        %v469 = vpop.f32.mrb[0].mxu0
        %v470 = vadd.f32 0.0, %v469
        %v471 = vpop.f32.mrb[0].mxu0
        %v472 = vpop.f32.mrb[0].mxu0
        %v473 = vpop.f32.mrb[0].mxu0
        %474 = vdwg.mxu0
        %v475 = vrcp.pop %v427
        %v476 = vmul.f32 %v470, %v475
        %477 = vst.msk [vmem:[#allocation3] sm:$0xff] %vm371, %v476
        %v478 = vld [vmem:[%s363] sm:$0xf]
        %v479 = vld [vmem:[%s363 + $0x4] sm:$0xf]
        %v481 = vunpack.c.l.b16 %v478
        %v482 = vpack.c.b16 %v481, %v481
        %483 = vrot.lane.b32.xlu0 %v482, 112
        %v484 = vpop.permute.xlu0 %483
        %485 = vrot.lane.b32.xlu0 %v482, 48
        %v486 = vpop.permute.xlu0 %485
        %v488 = vsel %vm371, %v484, 0
        %v491 = vsel %vm371, %v486, 0
        %493 = vmatprep.subr.bf16.mxu0 0
        %494 = vmatpush1.bf16.xpose.msra.mxu0 %v491
        %495 = vmatprep.subr.bf16.mxu0 0
        %496 = vmatpush1.bf16.xpose.msra.mxu0 0
        %497 = vmatprep.subr.bf16.mxu0 0
        %498 = vmatpush1.bf16.xpose.msra.mxu0 0
        %499 = vmatprep.subr.bf16.mxu0 0
        %500 = vmatpush1.bf16.xpose.msra.mxu0 0
        %501 = vmatprep.subr.bf16.mxu0 0
        %502 = vmatpush1.bf16.xpose.msra.mxu0 0
        %503 = vmatprep.subr.bf16.mxu0 0
        %504 = vmatpush1.bf16.xpose.msra.mxu0 0
        %505 = vmatprep.subr.bf16.mxu0 0
        %506 = vmatpush1.bf16.xpose.msra.mxu0 0
        %507 = vmatprep.subr.bf16.mxu0 0
        %508 = vmatpush1.bf16.xpose.msra.mxu0 0
        %509 = vmatprep.subr.bf16.mxu0 0
        %510 = vmatpush1.bf16.xpose.msra.mxu0 0
        %511 = vmatprep.subr.bf16.mxu0 0
        %512 = vmatpush1.bf16.xpose.msra.mxu0 0
        %513 = vmatprep.subr.bf16.mxu0 0
        %514 = vmatpush1.bf16.xpose.msra.mxu0 0
        %515 = vmatprep.subr.bf16.mxu0 0
        %516 = vmatpush1.bf16.xpose.msra.mxu0 0
        %517 = vmatprep.subr.bf16.mxu0 0
        %518 = vmatpush1.bf16.xpose.msra.mxu0 0
        %519 = vmatprep.subr.bf16.mxu0 0
        %520 = vmatpush1.bf16.xpose.msra.mxu0 0
        %521 = vmatprep.subr.bf16.mxu0 0
        %522 = vmatpush1.bf16.xpose.msra.mxu0 0
        %523 = vmatprep.subr.bf16.mxu0 0
        %524 = vmatpush1.bf16.xpose.msra.mxu0 0
        %525 = vmatprep.mubr.bf16.mxu0 0
        %526 = vmatmul.mubr.bf16.gmra.mrb[0].mxu0 %v488
        %v527 = vpop.f32.mrb[0].mxu0
        %v528 = vadd.f32 0.0, %v527
        %v529 = vpop.f32.mrb[0].mxu0
        %v530 = vpop.f32.mrb[0].mxu0
        %v531 = vpop.f32.mrb[0].mxu0
        %532 = vdwg.mxu0
        %v533 = vsel %vm418, %v528, -inf
        %534 = vmax.xlane.f32.xlu0 %v533
        %v535 = vpop.xlane.xlu0 %534
        %v536 = vsub.f32 %v528, %v535
        %v537 = vmul.f32 %v536, 1.442695
        %v538 = vpow.pop %v537
        %v539 = vsel %vm418, %v538, 0.0
        %540 = vadd.xlane.f32.xlu0 %v539
        %v541 = vpop.xlane.xlu0 %540
        %v542 = vpack.c.bf16 %v538, %v538
        %v544 = vunpack.c.l.b16 %v479
        %v545 = vpack.c.b16 %v544, %v544
        %546 = vrot.lane.b32.xlu0 %v545, 112
        %v547 = vpop.permute.xlu0 %546
        %v549 = vsel %vm418, %v542, 0
        %v552 = vsel %vm357, %v547, 0
        %554 = vmatprep.subr.bf16.mxu0 0
        %555 = vmatpush1.bf16.msra.mxu0 %v552
        %556 = vmatprep.subr.bf16.mxu0 0
        %557 = vmatpush1.bf16.msra.mxu0 0
        %558 = vmatprep.subr.bf16.mxu0 0
        %559 = vmatpush1.bf16.msra.mxu0 0
        %560 = vmatprep.subr.bf16.mxu0 0
        %561 = vmatpush1.bf16.msra.mxu0 0
        %562 = vmatprep.subr.bf16.mxu0 0
        %563 = vmatpush1.bf16.msra.mxu0 0
        %564 = vmatprep.subr.bf16.mxu0 0
        %565 = vmatpush1.bf16.msra.mxu0 0
        %566 = vmatprep.subr.bf16.mxu0 0
        %567 = vmatpush1.bf16.msra.mxu0 0
        %568 = vmatprep.subr.bf16.mxu0 0
        %569 = vmatpush1.bf16.msra.mxu0 0
        %570 = vmatprep.subr.bf16.mxu0 0
        %571 = vmatpush1.bf16.msra.mxu0 0
        %572 = vmatprep.subr.bf16.mxu0 0
        %573 = vmatpush1.bf16.msra.mxu0 0
        %574 = vmatprep.subr.bf16.mxu0 0
        %575 = vmatpush1.bf16.msra.mxu0 0
        %576 = vmatprep.subr.bf16.mxu0 0
        %577 = vmatpush1.bf16.msra.mxu0 0
        %578 = vmatprep.subr.bf16.mxu0 0
        %579 = vmatpush1.bf16.msra.mxu0 0
        %580 = vmatprep.subr.bf16.mxu0 0
        %581 = vmatpush1.bf16.msra.mxu0 0
        %582 = vmatprep.subr.bf16.mxu0 0
        %583 = vmatpush1.bf16.msra.mxu0 0
        %584 = vmatprep.subr.bf16.mxu0 0
        %585 = vmatpush1.bf16.msra.mxu0 0
        %586 = vmatprep.mubr.bf16.mxu0 0
        %587 = vmatmul.mubr.bf16.gmra.mrb[0].mxu0 %v549
        %v588 = vpop.f32.mrb[0].mxu0
        %v589 = vadd.f32 0.0, %v588
        %v590 = vpop.f32.mrb[0].mxu0
        %v591 = vpop.f32.mrb[0].mxu0
        %v592 = vpop.f32.mrb[0].mxu0
        %593 = vdwg.mxu0
        %v594 = vrcp.pop %v541
        %v595 = vmul.f32 %v589, %v594
        %597 = vrot.lane.b32.xlu0 %v595, 16
        %v598 = vpop.permute.xlu0 %597
        %vm600 = vcmask 261248
        %601 = vst.msk [vmem:[#allocation3] sm:$0xff] %vm600, %v598
        %v602 = vld [vmem:[%s363] sm:$0xf]
        %v603 = vld [vmem:[%s363 + $0x4] sm:$0xf]
        %v605 = vunpack.c.l.b16 %v602
        %v606 = vpack.c.b16 %v605, %v605
        %607 = vrot.lane.b32.xlu0 %v606, 96
        %v608 = vpop.permute.xlu0 %607
        %609 = vrot.lane.b32.xlu0 %v606, 32
        %v610 = vpop.permute.xlu0 %609
        %v612 = vsel %vm371, %v608, 0
        %v615 = vsel %vm371, %v610, 0
        %617 = vmatprep.subr.bf16.mxu0 0
        %618 = vmatpush1.bf16.xpose.msra.mxu0 %v615
        %619 = vmatprep.subr.bf16.mxu0 0
        %620 = vmatpush1.bf16.xpose.msra.mxu0 0
        %621 = vmatprep.subr.bf16.mxu0 0
        %622 = vmatpush1.bf16.xpose.msra.mxu0 0
        %623 = vmatprep.subr.bf16.mxu0 0
        %624 = vmatpush1.bf16.xpose.msra.mxu0 0
        %625 = vmatprep.subr.bf16.mxu0 0
        %626 = vmatpush1.bf16.xpose.msra.mxu0 0
        %627 = vmatprep.subr.bf16.mxu0 0
        %628 = vmatpush1.bf16.xpose.msra.mxu0 0
        %629 = vmatprep.subr.bf16.mxu0 0
        %630 = vmatpush1.bf16.xpose.msra.mxu0 0
        %631 = vmatprep.subr.bf16.mxu0 0
        %632 = vmatpush1.bf16.xpose.msra.mxu0 0
        %633 = vmatprep.subr.bf16.mxu0 0
        %634 = vmatpush1.bf16.xpose.msra.mxu0 0
        %635 = vmatprep.subr.bf16.mxu0 0
        %636 = vmatpush1.bf16.xpose.msra.mxu0 0
        %637 = vmatprep.subr.bf16.mxu0 0
        %638 = vmatpush1.bf16.xpose.msra.mxu0 0
        %639 = vmatprep.subr.bf16.mxu0 0
        %640 = vmatpush1.bf16.xpose.msra.mxu0 0
        %641 = vmatprep.subr.bf16.mxu0 0
        %642 = vmatpush1.bf16.xpose.msra.mxu0 0
        %643 = vmatprep.subr.bf16.mxu0 0
        %644 = vmatpush1.bf16.xpose.msra.mxu0 0
        %645 = vmatprep.subr.bf16.mxu0 0
        %646 = vmatpush1.bf16.xpose.msra.mxu0 0
        %647 = vmatprep.subr.bf16.mxu0 0
        %648 = vmatpush1.bf16.xpose.msra.mxu0 0
        %649 = vmatprep.mubr.bf16.mxu0 0
        %650 = vmatmul.mubr.bf16.gmra.mrb[0].mxu0 %v612
        %v651 = vpop.f32.mrb[0].mxu0
        %v652 = vadd.f32 0.0, %v651
        %v653 = vpop.f32.mrb[0].mxu0
        %v654 = vpop.f32.mrb[0].mxu0
        %v655 = vpop.f32.mrb[0].mxu0
        %656 = vdwg.mxu0
        %v657 = vsel %vm418, %v652, -inf
        %658 = vmax.xlane.f32.xlu0 %v657
        %v659 = vpop.xlane.xlu0 %658
        %v660 = vsub.f32 %v652, %v659
        %v661 = vmul.f32 %v660, 1.442695
        %v662 = vpow.pop %v661
        %v663 = vsel %vm418, %v662, 0.0
        %664 = vadd.xlane.f32.xlu0 %v663
        %v665 = vpop.xlane.xlu0 %664
        %v666 = vpack.c.bf16 %v662, %v662
        %v668 = vunpack.c.l.b16 %v603
        %v669 = vpack.c.b16 %v668, %v668
        %670 = vrot.lane.b32.xlu0 %v669, 96
        %v671 = vpop.permute.xlu0 %670
        %v673 = vsel %vm418, %v666, 0
        %v676 = vsel %vm357, %v671, 0
        %678 = vmatprep.subr.bf16.mxu0 0
        %679 = vmatpush1.bf16.msra.mxu0 %v676
        %680 = vmatprep.subr.bf16.mxu0 0
        %681 = vmatpush1.bf16.msra.mxu0 0
        %682 = vmatprep.subr.bf16.mxu0 0
        %683 = vmatpush1.bf16.msra.mxu0 0
        %684 = vmatprep.subr.bf16.mxu0 0
        %685 = vmatpush1.bf16.msra.mxu0 0
        %686 = vmatprep.subr.bf16.mxu0 0
        %687 = vmatpush1.bf16.msra.mxu0 0
        %688 = vmatprep.subr.bf16.mxu0 0
        %689 = vmatpush1.bf16.msra.mxu0 0
        %690 = vmatprep.subr.bf16.mxu0 0
        %691 = vmatpush1.bf16.msra.mxu0 0
        %692 = vmatprep.subr.bf16.mxu0 0
        %693 = vmatpush1.bf16.msra.mxu0 0
        %694 = vmatprep.subr.bf16.mxu0 0
        %695 = vmatpush1.bf16.msra.mxu0 0
        %696 = vmatprep.subr.bf16.mxu0 0
        %697 = vmatpush1.bf16.msra.mxu0 0
        %698 = vmatprep.subr.bf16.mxu0 0
        %699 = vmatpush1.bf16.msra.mxu0 0
        %700 = vmatprep.subr.bf16.mxu0 0
        %701 = vmatpush1.bf16.msra.mxu0 0
        %702 = vmatprep.subr.bf16.mxu0 0
        %703 = vmatpush1.bf16.msra.mxu0 0
        %704 = vmatprep.subr.bf16.mxu0 0
        %705 = vmatpush1.bf16.msra.mxu0 0
        %706 = vmatprep.subr.bf16.mxu0 0
        %707 = vmatpush1.bf16.msra.mxu0 0
        %708 = vmatprep.subr.bf16.mxu0 0
        %709 = vmatpush1.bf16.msra.mxu0 0
        %710 = vmatprep.mubr.bf16.mxu0 0
        %711 = vmatmul.mubr.bf16.gmra.mrb[0].mxu0 %v673
        %v712 = vpop.f32.mrb[0].mxu0
        %v713 = vadd.f32 0.0, %v712
        %v714 = vpop.f32.mrb[0].mxu0
        %v715 = vpop.f32.mrb[0].mxu0
        %v716 = vpop.f32.mrb[0].mxu0
        %717 = vdwg.mxu0
        %v718 = vrcp.pop %v665
        %v719 = vmul.f32 %v713, %v718
        %721 = vrot.lane.b32.xlu0 %v719, 32
        %v722 = vpop.permute.xlu0 %721
        %vm724 = vcmask 392448
        %725 = vst.msk [vmem:[#allocation3] sm:$0xff] %vm724, %v722
        %v726 = vld [vmem:[%s363] sm:$0xf]
        %v727 = vld [vmem:[%s363 + $0x4] sm:$0xf]
        %v729 = vunpack.c.l.b16 %v726
        %v730 = vpack.c.b16 %v729, %v729
        %731 = vrot.lane.b32.xlu0 %v730, 80
        %v732 = vpop.permute.xlu0 %731
        %733 = vrot.lane.b32.xlu0 %v730, 16
        %v734 = vpop.permute.xlu0 %733
        %v736 = vsel %vm371, %v732, 0
        %v739 = vsel %vm371, %v734, 0
        %741 = vmatprep.subr.bf16.mxu0 0
        %742 = vmatpush1.bf16.xpose.msra.mxu0 %v739
        %743 = vmatprep.subr.bf16.mxu0 0
        %744 = vmatpush1.bf16.xpose.msra.mxu0 0
        %745 = vmatprep.subr.bf16.mxu0 0
        %746 = vmatpush1.bf16.xpose.msra.mxu0 0
        %747 = vmatprep.subr.bf16.mxu0 0
        %748 = vmatpush1.bf16.xpose.msra.mxu0 0
        %749 = vmatprep.subr.bf16.mxu0 0
        %750 = vmatpush1.bf16.xpose.msra.mxu0 0
        %751 = vmatprep.subr.bf16.mxu0 0
        %752 = vmatpush1.bf16.xpose.msra.mxu0 0
        %753 = vmatprep.subr.bf16.mxu0 0
        %754 = vmatpush1.bf16.xpose.msra.mxu0 0
        %755 = vmatprep.subr.bf16.mxu0 0
        %756 = vmatpush1.bf16.xpose.msra.mxu0 0
        %757 = vmatprep.subr.bf16.mxu0 0
        %758 = vmatpush1.bf16.xpose.msra.mxu0 0
        %759 = vmatprep.subr.bf16.mxu0 0
        %760 = vmatpush1.bf16.xpose.msra.mxu0 0
        %761 = vmatprep.subr.bf16.mxu0 0
        %762 = vmatpush1.bf16.xpose.msra.mxu0 0
        %763 = vmatprep.subr.bf16.mxu0 0
        %764 = vmatpush1.bf16.xpose.msra.mxu0 0
        %765 = vmatprep.subr.bf16.mxu0 0
        %766 = vmatpush1.bf16.xpose.msra.mxu0 0
        %767 = vmatprep.subr.bf16.mxu0 0
        %768 = vmatpush1.bf16.xpose.msra.mxu0 0
        %769 = vmatprep.subr.bf16.mxu0 0
        %770 = vmatpush1.bf16.xpose.msra.mxu0 0
        %771 = vmatprep.subr.bf16.mxu0 0
        %772 = vmatpush1.bf16.xpose.msra.mxu0 0
        %773 = vmatprep.mubr.bf16.mxu0 0
        %774 = vmatmul.mubr.bf16.gmra.mrb[0].mxu0 %v736
        %v775 = vpop.f32.mrb[0].mxu0
        %v776 = vadd.f32 0.0, %v775
        %v777 = vpop.f32.mrb[0].mxu0
        %v778 = vpop.f32.mrb[0].mxu0
        %v779 = vpop.f32.mrb[0].mxu0
        %780 = vdwg.mxu0
        %v781 = vsel %vm418, %v776, -inf
        %782 = vmax.xlane.f32.xlu0 %v781
        %v783 = vpop.xlane.xlu0 %782
        %v784 = vsub.f32 %v776, %v783
        %v785 = vmul.f32 %v784, 1.442695
        %v786 = vpow.pop %v785
        %v787 = vsel %vm418, %v786, 0.0
        %788 = vadd.xlane.f32.xlu0 %v787
        %v789 = vpop.xlane.xlu0 %788
        %v790 = vpack.c.bf16 %v786, %v786
        %v792 = vunpack.c.l.b16 %v727
        %v793 = vpack.c.b16 %v792, %v792
        %794 = vrot.lane.b32.xlu0 %v793, 80
        %v795 = vpop.permute.xlu0 %794
        %v797 = vsel %vm418, %v790, 0
        %v800 = vsel %vm357, %v795, 0
        %802 = vmatprep.subr.bf16.mxu0 0
        %803 = vmatpush1.bf16.msra.mxu0 %v800
        %804 = vmatprep.subr.bf16.mxu0 0
        %805 = vmatpush1.bf16.msra.mxu0 0
        %806 = vmatprep.subr.bf16.mxu0 0
        %807 = vmatpush1.bf16.msra.mxu0 0
        %808 = vmatprep.subr.bf16.mxu0 0
        %809 = vmatpush1.bf16.msra.mxu0 0
        %810 = vmatprep.subr.bf16.mxu0 0
        %811 = vmatpush1.bf16.msra.mxu0 0
        %812 = vmatprep.subr.bf16.mxu0 0
        %813 = vmatpush1.bf16.msra.mxu0 0
        %814 = vmatprep.subr.bf16.mxu0 0
        %815 = vmatpush1.bf16.msra.mxu0 0
        %816 = vmatprep.subr.bf16.mxu0 0
        %817 = vmatpush1.bf16.msra.mxu0 0
        %818 = vmatprep.subr.bf16.mxu0 0
        %819 = vmatpush1.bf16.msra.mxu0 0
        %820 = vmatprep.subr.bf16.mxu0 0
        %821 = vmatpush1.bf16.msra.mxu0 0
        %822 = vmatprep.subr.bf16.mxu0 0
        %823 = vmatpush1.bf16.msra.mxu0 0
        %824 = vmatprep.subr.bf16.mxu0 0
        %825 = vmatpush1.bf16.msra.mxu0 0
        %826 = vmatprep.subr.bf16.mxu0 0
        %827 = vmatpush1.bf16.msra.mxu0 0
        %828 = vmatprep.subr.bf16.mxu0 0
        %829 = vmatpush1.bf16.msra.mxu0 0
        %830 = vmatprep.subr.bf16.mxu0 0
        %831 = vmatpush1.bf16.msra.mxu0 0
        %832 = vmatprep.subr.bf16.mxu0 0
        %833 = vmatpush1.bf16.msra.mxu0 0
        %834 = vmatprep.mubr.bf16.mxu0 0
        %835 = vmatmul.mubr.bf16.gmra.mrb[0].mxu0 %v797
        %v836 = vpop.f32.mrb[0].mxu0
        %v837 = vadd.f32 0.0, %v836
        %v838 = vpop.f32.mrb[0].mxu0
        %v839 = vpop.f32.mrb[0].mxu0
        %v840 = vpop.f32.mrb[0].mxu0
        %841 = vdwg.mxu0
        %v842 = vrcp.pop %v789
        %v843 = vmul.f32 %v837, %v842
        %845 = vrot.lane.b32.xlu0 %v843, 48
        %v846 = vpop.permute.xlu0 %845
        %vm848 = vcmask 523648
        %849 = vst.msk [vmem:[#allocation3] sm:$0xff] %vm848, %v846
        %v850 = vld [vmem:[#allocation3] sm:$0xff]
        %v851 = vpack.c.bf16 %v850, %v850
        %v852 = vld [vmem:[%s4] sm:$0xf]
        %v853 = vld [vmem:[%s4 + $0x4] sm:$0xf]
        %v854 = vld [vmem:[%s4 + $0x8] sm:$0xf]
        %v855 = vld [vmem:[%s4 + $0xc] sm:$0xf]
        %v856 = vld [vmem:[%s4 + $0x10] sm:$0xf]
        %v857 = vld [vmem:[%s4 + $0x14] sm:$0xf]
        %v858 = vld [vmem:[%s4 + $0x18] sm:$0xf]
        %v859 = vld [vmem:[%s4 + $0x1c] sm:$0xf]
        %v860 = vld [vmem:[%s5] sm:$0x1]
        %v862 = vlaneseq
        %v863 = vshrl.u32 %v862, 7
        %v864 = vsub.s32 0, %v863
        %v865 = vrot.slane %v860, %v864
        %v875 = vunpack.c.l.b16 %v852
        %v876 = vunpack.c.l.b16 %v853
        %v877 = vunpack.c.l.b16 %v854
        %v878 = vunpack.c.l.b16 %v855
        %v879 = vunpack.c.l.b16 %v856
        %v880 = vunpack.c.l.b16 %v857
        %v881 = vunpack.c.l.b16 %v858
        %v882 = vunpack.c.l.b16 %v859
        %v883 = vpack.c.b16 %v876, %v875
        %v884 = vpack.c.b16 %v878, %v877
        %v885 = vpack.c.b16 %v880, %v879
        %v886 = vpack.c.b16 %v882, %v881
        %vm891 = vcmask 523264
        %v893 = vsel %vm891, %v851, 0
        %895 = vmatprep.subr.bf16.mxu0 0
        %896 = vmatpush1.bf16.msra.mxu0 %v883
        %897 = vmatprep.subr.bf16.mxu0 0
        %898 = vmatpush1.bf16.msra.mxu0 %v884
        %899 = vmatprep.subr.bf16.mxu0 0
        %900 = vmatpush1.bf16.msra.mxu0 %v885
        %901 = vmatprep.subr.bf16.mxu0 0
        %902 = vmatpush1.bf16.msra.mxu0 %v886
        %903 = vmatprep.subr.bf16.mxu0 0
        %904 = vmatpush1.bf16.msra.mxu0 0
        %905 = vmatprep.subr.bf16.mxu0 0
        %906 = vmatpush1.bf16.msra.mxu0 0
        %907 = vmatprep.subr.bf16.mxu0 0
        %908 = vmatpush1.bf16.msra.mxu0 0
        %909 = vmatprep.subr.bf16.mxu0 0
        %910 = vmatpush1.bf16.msra.mxu0 0
        %911 = vmatprep.subr.bf16.mxu0 0
        %912 = vmatpush1.bf16.msra.mxu0 0
        %913 = vmatprep.subr.bf16.mxu0 0
        %914 = vmatpush1.bf16.msra.mxu0 0
        %915 = vmatprep.subr.bf16.mxu0 0
        %916 = vmatpush1.bf16.msra.mxu0 0
        %917 = vmatprep.subr.bf16.mxu0 0
        %918 = vmatpush1.bf16.msra.mxu0 0
        %919 = vmatprep.subr.bf16.mxu0 0
        %920 = vmatpush1.bf16.msra.mxu0 0
        %921 = vmatprep.subr.bf16.mxu0 0
        %922 = vmatpush1.bf16.msra.mxu0 0
        %923 = vmatprep.subr.bf16.mxu0 0
        %924 = vmatpush1.bf16.msra.mxu0 0
        %925 = vmatprep.subr.bf16.mxu0 0
        %926 = vmatpush1.bf16.msra.mxu0 0
        %927 = vmatprep.mubr.bf16.mxu0 0
        %928 = vmatmul.mubr.bf16.gmra.mrb[0].mxu0 %v893
        %v929 = vpop.f32.mrb[0].mxu0
        %v930 = vadd.f32 %v865, %v929
        %v931 = vpop.f32.mrb[0].mxu0
        %v932 = vpop.f32.mrb[0].mxu0
        %v933 = vpop.f32.mrb[0].mxu0
        %934 = vdwg.mxu0
        %935 = vst.msk [vmem:[%s242] sm:$0xff] %vm249, %v930
        %s936 = sand.u32 %s159, 1
        %s937 = scalar_lea.sflag [#allocation5], %s936
        %s938 = sand.u32 %s159, 1
        %s939 = smul.addr %s938, 8
        %s940 = scalar_lea.vmem [#allocation4], %s939
        // Predicated region
        $region45: #{tpu_custom_call.1} parent=43 // pred_check
          %p941 = pneg %p169
        $region46: #{tpu_custom_call.1} parent=43 // pred_check_branch
          %943 = sbr.rel (%p941) target = $region48
        $region47: #{tpu_custom_call.1} parent=43 // pred_region
          %s945 = ssub.s32 128, 128
          %946 = vsyncadd %s937, %s945
          %s947 = smul.addr %s20, 128
          %s948 = scalar_lea.hbm %s6, %s947
          %s950 = sshll.u32 %s940, 4
          %s951 = int_to_ptr.vmem [resolvable:$true] %s950
          %953 = dma.vmem_to_hbm [thread:$0]  %s951, 128, %s948, %s937
        $region48: #{tpu_custom_call.1} parent=43 // pred_fallthru
          _
      $region44: #{tpu_custom_call.1} parent=5 // pred_fallthru
        _
      %p954 = scmp.le.s32.totalorder 2, %s15
      // Predicated region
      $region49: #{tpu_custom_call.1} parent=5 // pred_check
        %p955 = pneg %p954
      $region50: #{tpu_custom_call.1} parent=5 // pred_check_branch
        %957 = sbr.rel (%p955) target = $region52
      $region51: #{tpu_custom_call.1} parent=5 // pred_region
        %s958 = ssub.s32 %s15, 2
        // Predicated region
        $region53: #{tpu_custom_call.1} parent=51 // pred_check
          %p959 = pneg %p175
        $region54: #{tpu_custom_call.1} parent=51 // pred_check_branch
          %961 = sbr.rel (%p959) target = $region56
        $region55: #{tpu_custom_call.1} parent=51 // pred_region
          %s962 = sand.u32 %s160, 1
          %s963 = scalar_lea.sflag [#allocation5], %s962
          %s964 = sand.u32 %s160, 1
          %s965 = smul.addr %s964, 8
          %s966 = scalar_lea.vmem [#allocation4], %s965
          %967 = dma.done %s963, 128
        $region56: #{tpu_custom_call.1} parent=51 // pred_fallthru
          _
      $region52: #{tpu_custom_call.1} parent=5 // pred_fallthru
        _
    $region6: #{tpu_custom_call.1} parent=1 // loop_footer
      %s19 = sadd.s32 1, %s15
    $region7: #{tpu_custom_call.1} parent=1 // loop_footer_branch
      %14 = sbr.rel target = $region3
    $region8: #{tpu_custom_call.1} parent=1 // loop_exit
      _
    %968 = vsyncpa [#allocation5], 1
    %s969 = scalar_lea.sflag [#allocation5], 1
    %970 = vsyncpa %s969, 1

</llo_original>
